<compile_context>
chip_gen: v5e
topology: v5e:2x2
jax: 0.10.0
libtpu: 0.0.40
codegen_flags: <defaults>
</compile_context>

<pallas_src>
import jax
import jax.numpy as jnp
from jax.experimental import pallas as pl
from jax.experimental.pallas import tpu as pltpu

NUM_INPUT = 28 * 28       # 784
NUM_HIDDEN = 64
NUM_CLASSES = 10
NUM_CLASSES_PAD = 128     # lane-dense output width (multiple of 128)

# Batch tile: multiple of 8 (f32 sublane). 2048 rows of f32 x => 2 x 6.3 MiB
# double-buffered input tiles + ~0.5 MiB of resident weights + ~2 MiB of
# output buffers ~= 15 MiB, covered by the explicit 32 MiB vmem limit below
# on v5e/v6e and comfortably inside v7x's 64 MiB physical VMEM.
TB_MAX = 2048
VMEM_LIMIT_BYTES = 32 * 1024 * 1024


def _round_up(x, m):
    return (x + m - 1) // m * m


def _mlp_kernel(x_ref, w1_ref, b1_ref, w2_ref, b2_ref, out_ref):
    """Fused two-layer MLP: out = (x @ W1 + b1) @ W2 + b2 (no activation)."""
    # x may be bf16 in HBM (halves the dominant HBM stream); upcast in VMEM.
    x = x_ref[...].astype(jnp.float32)                                # (TB, 784)
    h = jnp.dot(x, w1_ref[...], preferred_element_type=jnp.float32)  # (TB, 64)
    h = h + b1_ref[...]                                               # broadcast (1, 64)
    o = jnp.dot(h, w2_ref[...], preferred_element_type=jnp.float32)  # (TB, 128)
    o = o + b2_ref[...]                                               # broadcast (1, 128)
    # Note: if exact f32 parity with torch matters, add
    # precision=jax.lax.Precision.HIGHEST to the dots (default passes 1e-4).
    out_ref[...] = o.astype(out_ref.dtype)


@jax.jit
def double_layer_forward(x, w1, b1, w2p, b2p):
    """x: (B, 1, 28, 28) / (B, 28, 28) / (B, 784) -> (B, 10).

    w2p/b2p must be the lane-padded (64, 128)/(1, 128) params from
    `prepare_params`. Output dtype matches the input dtype (f32 -> f32,
    bf16 -> bf16); accumulation is always f32 on the MXU.
    """
    x2d = x.reshape(-1, NUM_INPUT)                 # glue: torch .view(-1, 784)
    if x2d.dtype not in (jnp.bfloat16, jnp.float32):
        x2d = x2d.astype(jnp.float32)
    batch = x2d.shape[0]
    out_dtype = x2d.dtype

    # Batch tile: multiple of 8, capped at TB_MAX. Force >=2 grid steps when
    # possible so the "parallel" axis shards across both v7x TensorCores.
    tb = min(TB_MAX, _round_up(batch, 8))
    if pl.cdiv(batch, tb) < 2 and batch > 8:
        tb = max(8, _round_up(pl.cdiv(batch, 2), 8))
    grid = (pl.cdiv(batch, tb),)
    # Ragged tail: the final block may overhang the batch. OOB input rows are
    # unspecified, but the matmul is row-wise and OOB output rows are never
    # stored, so valid rows are unaffected. Do NOT add cross-row reductions
    # to the kernel without revisiting this.

    flops = 2 * batch * (NUM_INPUT * NUM_HIDDEN + NUM_HIDDEN * NUM_CLASSES_PAD)
    bytes_accessed = (
        batch * NUM_INPUT * x2d.dtype.itemsize                 # stream x
        + batch * NUM_CLASSES_PAD * jnp.dtype(out_dtype).itemsize  # write out
        + 4 * (NUM_INPUT * NUM_HIDDEN + NUM_HIDDEN              # W1, b1 (resident)
               + NUM_HIDDEN * NUM_CLASSES_PAD + NUM_CLASSES_PAD)  # W2, b2 (resident)
    )

    out = pl.pallas_call(
        _mlp_kernel,
        out_shape=jax.ShapeDtypeStruct((batch, NUM_CLASSES_PAD), out_dtype),
        grid=grid,
        in_specs=[
            # x: streamed per batch tile (double-buffered by the pipeline)
            pl.BlockSpec((tb, NUM_INPUT), lambda i: (i, 0)),
            # weights / biases: same block every step -> stay resident in VMEM
            pl.BlockSpec((NUM_INPUT, NUM_HIDDEN), lambda i: (0, 0)),
            pl.BlockSpec((1, NUM_HIDDEN), lambda i: (0, 0)),
            pl.BlockSpec((NUM_HIDDEN, NUM_CLASSES_PAD), lambda i: (0, 0)),
            pl.BlockSpec((1, NUM_CLASSES_PAD), lambda i: (0, 0)),
        ],
        out_specs=pl.BlockSpec((tb, NUM_CLASSES_PAD), lambda i: (i, 0)),
        compiler_params=pltpu.CompilerParams(
            dimension_semantics=("parallel",),
            vmem_limit_bytes=VMEM_LIMIT_BYTES,
        ),
        cost_estimate=pl.CostEstimate(
            flops=flops, transcendentals=0, bytes_accessed=bytes_accessed),
    )(x2d, w1, b1, w2p, b2p)

    # Lane-padded columns [10:128] are exactly zero; slice them off.
    return out[:, :NUM_CLASSES]


def prepare_params(w1, b1, w2, b2):
    """One-time param prep (hoisted out of the per-call path): zero-pad the
    second layer from 10 -> 128 output columns so kernel stores are
    unmasked, lane-dense full-vreg writes."""
    w2p = jnp.pad(w2, ((0, 0), (0, NUM_CLASSES_PAD - NUM_CLASSES)))
    b2p = jnp.pad(b2, ((0, 0), (0, NUM_CLASSES_PAD - NUM_CLASSES)))
    return (w1.astype(jnp.float32), b1.astype(jnp.float32),
            w2p.astype(jnp.float32), b2p.astype(jnp.float32))


def init_params(key):
    """Deterministic init mirroring torch.nn.Linear default (U[-1/sqrt(fan_in), +])."""
    k1, k2, k3, k4 = jax.random.split(key, 4)
    bound1 = 1.0 / jnp.sqrt(jnp.float32(NUM_INPUT))
    bound2 = 1.0 / jnp.sqrt(jnp.float32(NUM_HIDDEN))
    # Stored pre-transposed: (in, out) so the kernel computes x @ W + b,
    # equivalent to torch's x @ W_torch.T + b.
    w1 = jax.random.uniform(k1, (NUM_INPUT, NUM_HIDDEN), jnp.float32, -bound1, bound1)
    b1 = jax.random.uniform(k2, (1, NUM_HIDDEN), jnp.float32, -bound1, bound1)
    w2 = jax.random.uniform(k3, (NUM_HIDDEN, NUM_CLASSES), jnp.float32, -bound2, bound2)
    b2 = jax.random.uniform(k4, (1, NUM_CLASSES), jnp.float32, -bound2, bound2)
    return w1, b1, w2, b2


if __name__ == "__main__":
    key = jax.random.PRNGKey(0)
    k_x, k_p = jax.random.split(key)

    w1, b1, w2, b2 = init_params(k_p)
    w1p, b1p, w2p, b2p = prepare_params(w1, b1, w2, b2)

    # Small f32 batch, NCHW like the torch MNIST input.
    batch = 2
    x = jax.random.normal(k_x, (batch, 1, 28, 28), jnp.float32)
    out = jax.block_until_ready(double_layer_forward(x, w1p, b1p, w2p, b2p))
    ref = (x.reshape(-1, NUM_INPUT) @ w1 + b1) @ w2 + b2
    assert out.shape == (batch, NUM_CLASSES)
    assert out.dtype == jnp.float32
    assert jnp.allclose(out, ref, atol=1e-4, rtol=1e-4)

    # Batch that is not a multiple of the tile size: exercises the ragged
    # final grid block (no host-side padding anymore).
    batch2 = 37
    x_big = jax.random.normal(k_x, (batch2, 1, 28, 28), jnp.float32)
    out_big = jax.block_until_ready(double_layer_forward(x_big, w1p, b1p, w2p, b2p))
    ref_big = (x_big.reshape(-1, NUM_INPUT) @ w1 + b1) @ w2 + b2
    assert out_big.shape == (batch2, NUM_CLASSES)
    assert jnp.allclose(out_big, ref_big, atol=1e-4, rtol=1e-4)

    # bf16 streaming path: x stays bf16 end-to-end (halves the dominant HBM
    # stream); accumulation is f32, output comes back bf16.
    x_bf16 = x_big.astype(jnp.bfloat16)
    out_bf16 = jax.block_until_ready(double_layer_forward(x_bf16, w1p, b1p, w2p, b2p))
    ref_bf16 = (x_bf16.astype(jnp.float32).reshape(-1, NUM_INPUT) @ w1 + b1) @ w2 + b2
    assert out_bf16.shape == (batch2, NUM_CLASSES)
    assert out_bf16.dtype == jnp.bfloat16
    assert jnp.allclose(out_bf16.astype(jnp.float32), ref_bf16, atol=3e-2, rtol=3e-2)

    print("KERNEL_OK")
</pallas_src>

<mosaic_0001>
module attributes {stable_mosaic.version = 11 : i64} {
  func.func @_mlp_kernel(%arg0: i32, %arg1: memref<8x784xf32, #tpu.memory_space<vmem>>, %arg2: memref<784x64xf32, #tpu.memory_space<vmem>>, %arg3: memref<1x64xf32, #tpu.memory_space<vmem>>, %arg4: memref<64x128xf32, #tpu.memory_space<vmem>>, %arg5: memref<1x128xf32, #tpu.memory_space<vmem>>, %arg6: memref<8x128xf32, #tpu.memory_space<vmem>>) attributes {dimension_semantics = [#tpu.dimension_semantics<parallel>], iteration_bounds = array<i64: 1>, scalar_prefetch = 0 : i64, scratch_operands = 0 : i64, tpu.core_type = #tpu.core_type<tc>, window_params = [{transform_indices = @transform_0, window_bounds = array<i64: 8, 784>}, {pipeline_mode = #tpu.pipeline_mode<synchronous>, transform_indices = @transform_1, window_bounds = array<i64: 784, 64>}, {pipeline_mode = #tpu.pipeline_mode<synchronous>, transform_indices = @transform_2, window_bounds = array<i64: 1, 64>}, {pipeline_mode = #tpu.pipeline_mode<synchronous>, transform_indices = @transform_3, window_bounds = array<i64: 64, 128>}, {pipeline_mode = #tpu.pipeline_mode<synchronous>, transform_indices = @transform_4, window_bounds = array<i64: 1, 128>}, {transform_indices = @transform_5, window_bounds = array<i64: 8, 128>}]} {
    %c0 = arith.constant 0 : index
    %c0_0 = arith.constant 0 : index
    %0 = vector.load %arg1[%c0, %c0_0] : memref<8x784xf32, #tpu.memory_space<vmem>>, vector<8x784xf32>
    %c0_1 = arith.constant 0 : index
    %c0_2 = arith.constant 0 : index
    %1 = vector.load %arg2[%c0_1, %c0_2] : memref<784x64xf32, #tpu.memory_space<vmem>>, vector<784x64xf32>
    %cst = arith.constant dense<0.000000e+00> : vector<8x64xf32>
    %2 = tpu.matmul %0, %1, %cst {dimension_numbers = #tpu.dot_dimension_numbers<[1], [0], [0], [1], [0, 0, 1, 1], [], []>} : vector<8x784xf32>, vector<784x64xf32>, vector<8x64xf32> -> vector<8x64xf32>
    %c0_3 = arith.constant 0 : index
    %c0_4 = arith.constant 0 : index
    %3 = vector.load %arg3[%c0_3, %c0_4] : memref<1x64xf32, #tpu.memory_space<vmem>>, vector<1x64xf32>
    %4 = vector.broadcast %3 : vector<1x64xf32> to vector<8x64xf32>
    %5 = arith.addf %2, %4 : vector<8x64xf32>
    %c0_5 = arith.constant 0 : index
    %c0_6 = arith.constant 0 : index
    %6 = vector.load %arg4[%c0_5, %c0_6] : memref<64x128xf32, #tpu.memory_space<vmem>>, vector<64x128xf32>
    %cst_7 = arith.constant dense<0.000000e+00> : vector<8x128xf32>
    %7 = tpu.matmul %5, %6, %cst_7 {dimension_numbers = #tpu.dot_dimension_numbers<[1], [0], [0], [1], [0, 0, 1, 1], [], []>} : vector<8x64xf32>, vector<64x128xf32>, vector<8x128xf32> -> vector<8x128xf32>
    %c0_8 = arith.constant 0 : index
    %c0_9 = arith.constant 0 : index
    %8 = vector.load %arg5[%c0_8, %c0_9] : memref<1x128xf32, #tpu.memory_space<vmem>>, vector<1x128xf32>
    %9 = vector.broadcast %8 : vector<1x128xf32> to vector<8x128xf32>
    %10 = arith.addf %7, %9 : vector<8x128xf32>
    %c0_10 = arith.constant 0 : index
    %c0_11 = arith.constant 0 : index
    %11 = vector.load %arg6[%c0_10, %c0_11] : memref<8x128xf32, #tpu.memory_space<vmem>>, vector<8x128xf32>
    tpu.vector_store %arg6[%c0_10, %c0_11], %10 {strides = array<i32>} : memref<8x128xf32, #tpu.memory_space<vmem>>, vector<8x128xf32>,
    return
  }
  func.func @transform_0(%arg0: i32) -> (i32, i32) {
    %c0_i32 = arith.constant 0 : i32
    %c0_i32_0 = arith.constant 0 : i32
    return %arg0, %c0_i32 : i32, i32
  }
  func.func @transform_1(%arg0: i32) -> (i32, i32) {
    %c0_i32 = arith.constant 0 : i32
    %c0_i32_0 = arith.constant 0 : i32
    %c0_i32_1 = arith.constant 0 : i32
    return %c0_i32, %c0_i32_0 : i32, i32
  }
  func.func @transform_2(%arg0: i32) -> (i32, i32) {
    %c0_i32 = arith.constant 0 : i32
    %c0_i32_0 = arith.constant 0 : i32
    %c0_i32_1 = arith.constant 0 : i32
    return %c0_i32, %c0_i32_0 : i32, i32
  }
  func.func @transform_3(%arg0: i32) -> (i32, i32) {
    %c0_i32 = arith.constant 0 : i32
    %c0_i32_0 = arith.constant 0 : i32
    %c0_i32_1 = arith.constant 0 : i32
    return %c0_i32, %c0_i32_0 : i32, i32
  }
  func.func @transform_4(%arg0: i32) -> (i32, i32) {
    %c0_i32 = arith.constant 0 : i32
    %c0_i32_0 = arith.constant 0 : i32
    %c0_i32_1 = arith.constant 0 : i32
    return %c0_i32, %c0_i32_0 : i32, i32
  }
  func.func @transform_5(%arg0: i32) -> (i32, i32) {
    %c0_i32 = arith.constant 0 : i32
    %c0_i32_0 = arith.constant 0 : i32
    return %arg0, %c0_i32 : i32, i32
  }
}

</mosaic_0001>

<llo_original>
// kernel: double_layer_forward.1
$region0: #{double_layer_forward.1}
  #allocation0 [shape = 'u32[]', space=smem, size = 0x4, offset = 0x4, fixed_abs, tag = 'smem constant byte address 0x4 - core index']
  #allocation1 [shape = 'u32[72,128]{1,0:T(1,128)}', space=vmem, size = 0x9000, scoped, tag = 'internal scratch']
  %s0 = inlined_call_operand.vmem [shape: f32[2,784], index: 0, kind: input, shape index: {}]
  %s1 = inlined_call_operand.vmem [shape: f32[784,64], index: 1, kind: input, shape index: {}]
  %s2 = inlined_call_operand.vmem [shape: f32[1,64], index: 2, kind: input, shape index: {}]
  %s3 = inlined_call_operand.vmem [shape: f32[64,128], index: 3, kind: input, shape index: {}]
  %s4 = inlined_call_operand.vmem [shape: f32[1,128], index: 4, kind: input, shape index: {}]
  %s5 = inlined_call_operand.hbm [shape: f32[2,128], index: 5, kind: output, shape index: {}]
  %s6 = sld [smem:[#allocation0]]
  $region30: #{double_layer_forward.1} parent=0
    _
  %s8 = ssub.s32 1, %s6
  %s9 = scalar_select 0, %s8, %s6
  $region1: #{double_layer_forward.1} parent=0
    #allocation2 [shape = 'u8[4096]{0}', space=vmem, size = 0x1000, scoped, tag = 'output window, operand 0, single buffered']
    #allocation3 [shape = 's32[1]{0}', space=sflag, size = 0x4, scoped, tag = 'scoped memory for double_layer_forward.1']
    %10 = vsyncpa [#allocation3], 0
    // Predicated region
    $region2: #{double_layer_forward.1} parent=1 // pred_check
      _
    $region3: #{double_layer_forward.1} parent=1 // pred_check_branch
      %12 = sbr.rel (0) target = $region5
    $region4: #{double_layer_forward.1} parent=1 // pred_region
      _
    $region5: #{double_layer_forward.1} parent=1 // pred_fallthru
      _
    // Predicated region
    $region6: #{double_layer_forward.1} parent=1 // pred_check
      _
    $region7: #{double_layer_forward.1} parent=1 // pred_check_branch
      %14 = sbr.rel (0) target = $region9
    $region8: #{double_layer_forward.1} parent=1 // pred_region
      _
    $region9: #{double_layer_forward.1} parent=1 // pred_fallthru
      _
    // Predicated region
    $region10: #{double_layer_forward.1} parent=1 // pred_check
      _
    $region11: #{double_layer_forward.1} parent=1 // pred_check_branch
      %16 = sbr.rel (0) target = $region13
    $region12: #{double_layer_forward.1} parent=1 // pred_region
      _
    $region13: #{double_layer_forward.1} parent=1 // pred_fallthru
      _
    // Predicated region
    $region14: #{double_layer_forward.1} parent=1 // pred_check
      _
    $region15: #{double_layer_forward.1} parent=1 // pred_check_branch
      %18 = sbr.rel (0) target = $region17
    $region16: #{double_layer_forward.1} parent=1 // pred_region
      _
    $region17: #{double_layer_forward.1} parent=1 // pred_fallthru
      _
    // Predicated region
    $region18: #{double_layer_forward.1} parent=1 // pred_check
      _
    $region19: #{double_layer_forward.1} parent=1 // pred_check_branch
      %20 = sbr.rel (0) target = $region21
    $region20: #{double_layer_forward.1} parent=1 // pred_region
      _
    $region21: #{double_layer_forward.1} parent=1 // pred_fallthru
      _
    %v21 = vld [vmem:[%s0] sm:$0xff]
    %v22 = vld [vmem:[%s0 + $0x8] sm:$0x3f]
    %v23 = vld [vmem:[%s0 + $0xe] sm:$0xff]
    %v24 = vld [vmem:[%s0 + $0x16] sm:$0x3f]
    %v25 = vld [vmem:[%s0 + $0x1c] sm:$0xff]
    %v26 = vld [vmem:[%s0 + $0x24] sm:$0x3f]
    %v27 = vld [vmem:[%s0 + $0x2a] sm:$0xff]
    %v28 = vld [vmem:[%s0 + $0x32] sm:$0x3f]
    %v29 = vld [vmem:[%s1] sm:$0xff]
    %v30 = vld [vmem:[%s1 + $0x8] sm:$0xff]
    %v31 = vld [vmem:[%s1 + $0x10] sm:$0xff]
    %v32 = vld [vmem:[%s1 + $0x18] sm:$0xff]
    %v33 = vld [vmem:[%s1 + $0x20] sm:$0xff]
    %v34 = vld [vmem:[%s1 + $0x28] sm:$0xff]
    %v35 = vld [vmem:[%s1 + $0x30] sm:$0xff]
    %v36 = vld [vmem:[%s1 + $0x38] sm:$0xff]
    %v37 = vld [vmem:[%s1 + $0x40] sm:$0xff]
    %v38 = vld [vmem:[%s1 + $0x48] sm:$0xff]
    %v39 = vld [vmem:[%s1 + $0x50] sm:$0xff]
    %v40 = vld [vmem:[%s1 + $0x58] sm:$0xff]
    %v41 = vld [vmem:[%s1 + $0x60] sm:$0xff]
    %v42 = vld [vmem:[%s1 + $0x68] sm:$0xff]
    %v43 = vld [vmem:[%s1 + $0x70] sm:$0xff]
    %v44 = vld [vmem:[%s1 + $0x78] sm:$0xff]
    %v45 = vld [vmem:[%s1 + $0x80] sm:$0xff]
    %v46 = vld [vmem:[%s1 + $0x88] sm:$0xff]
    %v47 = vld [vmem:[%s1 + $0x90] sm:$0xff]
    %v48 = vld [vmem:[%s1 + $0x98] sm:$0xff]
    %v49 = vld [vmem:[%s1 + $0xa0] sm:$0xff]
    %v50 = vld [vmem:[%s1 + $0xa8] sm:$0xff]
    %v51 = vld [vmem:[%s1 + $0xb0] sm:$0xff]
    %v52 = vld [vmem:[%s1 + $0xb8] sm:$0xff]
    %v53 = vld [vmem:[%s1 + $0xc0] sm:$0xff]
    %v54 = vld [vmem:[%s1 + $0xc8] sm:$0xff]
    %v55 = vld [vmem:[%s1 + $0xd0] sm:$0xff]
    %v56 = vld [vmem:[%s1 + $0xd8] sm:$0xff]
    %v57 = vld [vmem:[%s1 + $0xe0] sm:$0xff]
    %v58 = vld [vmem:[%s1 + $0xe8] sm:$0xff]
    %v59 = vld [vmem:[%s1 + $0xf0] sm:$0xff]
    %v60 = vld [vmem:[%s1 + $0xf8] sm:$0xff]
    %v61 = vld [vmem:[%s1 + $0x100] sm:$0xff]
    %v62 = vld [vmem:[%s1 + $0x108] sm:$0xff]
    %v63 = vld [vmem:[%s1 + $0x110] sm:$0xff]
    %v64 = vld [vmem:[%s1 + $0x118] sm:$0xff]
    %v65 = vld [vmem:[%s1 + $0x120] sm:$0xff]
    %v66 = vld [vmem:[%s1 + $0x128] sm:$0xff]
    %v67 = vld [vmem:[%s1 + $0x130] sm:$0xff]
    %v68 = vld [vmem:[%s1 + $0x138] sm:$0xff]
    %v69 = vld [vmem:[%s1 + $0x140] sm:$0xff]
    %v70 = vld [vmem:[%s1 + $0x148] sm:$0xff]
    %v71 = vld [vmem:[%s1 + $0x150] sm:$0xff]
    %v72 = vld [vmem:[%s1 + $0x158] sm:$0xff]
    %v73 = vld [vmem:[%s1 + $0x160] sm:$0xff]
    %v74 = vld [vmem:[%s1 + $0x168] sm:$0xff]
    %v75 = vld [vmem:[%s1 + $0x170] sm:$0xff]
    %v76 = vld [vmem:[%s1 + $0x178] sm:$0xff]
    %v77 = vld [vmem:[%s1 + $0x180] sm:$0xff]
    %v78 = vld [vmem:[%s1 + $0x188] sm:$0xff]
    %v79 = vld [vmem:[%s1 + $0x190] sm:$0xff]
    %v80 = vld [vmem:[%s1 + $0x198] sm:$0xff]
    %v81 = vld [vmem:[%s1 + $0x1a0] sm:$0xff]
    %v82 = vld [vmem:[%s1 + $0x1a8] sm:$0xff]
    %v83 = vld [vmem:[%s1 + $0x1b0] sm:$0xff]
    %v84 = vld [vmem:[%s1 + $0x1b8] sm:$0xff]
    %v85 = vld [vmem:[%s1 + $0x1c0] sm:$0xff]
    %v86 = vld [vmem:[%s1 + $0x1c8] sm:$0xff]
    %v87 = vld [vmem:[%s1 + $0x1d0] sm:$0xff]
    %v88 = vld [vmem:[%s1 + $0x1d8] sm:$0xff]
    %v89 = vld [vmem:[%s1 + $0x1e0] sm:$0xff]
    %v90 = vld [vmem:[%s1 + $0x1e8] sm:$0xff]
    %v91 = vld [vmem:[%s1 + $0x1f0] sm:$0xff]
    %v92 = vld [vmem:[%s1 + $0x1f8] sm:$0xff]
    %v93 = vld [vmem:[%s1 + $0x200] sm:$0xff]
    %v94 = vld [vmem:[%s1 + $0x208] sm:$0xff]
    %v95 = vld [vmem:[%s1 + $0x210] sm:$0xff]
    %v96 = vld [vmem:[%s1 + $0x218] sm:$0xff]
    %v97 = vld [vmem:[%s1 + $0x220] sm:$0xff]
    %v98 = vld [vmem:[%s1 + $0x228] sm:$0xff]
    %v99 = vld [vmem:[%s1 + $0x230] sm:$0xff]
    %v100 = vld [vmem:[%s1 + $0x238] sm:$0xff]
    %v101 = vld [vmem:[%s1 + $0x240] sm:$0xff]
    %v102 = vld [vmem:[%s1 + $0x248] sm:$0xff]
    %v103 = vld [vmem:[%s1 + $0x250] sm:$0xff]
    %v104 = vld [vmem:[%s1 + $0x258] sm:$0xff]
    %v105 = vld [vmem:[%s1 + $0x260] sm:$0xff]
    %v106 = vld [vmem:[%s1 + $0x268] sm:$0xff]
    %v107 = vld [vmem:[%s1 + $0x270] sm:$0xff]
    %v108 = vld [vmem:[%s1 + $0x278] sm:$0xff]
    %v109 = vld [vmem:[%s1 + $0x280] sm:$0xff]
    %v110 = vld [vmem:[%s1 + $0x288] sm:$0xff]
    %v111 = vld [vmem:[%s1 + $0x290] sm:$0xff]
    %v112 = vld [vmem:[%s1 + $0x298] sm:$0xff]
    %v113 = vld [vmem:[%s1 + $0x2a0] sm:$0xff]
    %v114 = vld [vmem:[%s1 + $0x2a8] sm:$0xff]
    %v115 = vld [vmem:[%s1 + $0x2b0] sm:$0xff]
    %v116 = vld [vmem:[%s1 + $0x2b8] sm:$0xff]
    %v117 = vld [vmem:[%s1 + $0x2c0] sm:$0xff]
    %v118 = vld [vmem:[%s1 + $0x2c8] sm:$0xff]
    %v119 = vld [vmem:[%s1 + $0x2d0] sm:$0xff]
    %v120 = vld [vmem:[%s1 + $0x2d8] sm:$0xff]
    %v121 = vld [vmem:[%s1 + $0x2e0] sm:$0xff]
    %v122 = vld [vmem:[%s1 + $0x2e8] sm:$0xff]
    %v123 = vld [vmem:[%s1 + $0x2f0] sm:$0xff]
    %v124 = vld [vmem:[%s1 + $0x2f8] sm:$0xff]
    %v125 = vld [vmem:[%s1 + $0x300] sm:$0xff]
    %v126 = vld [vmem:[%s1 + $0x308] sm:$0xff]
    %v127 = vld [vmem:[%s2] sm:$0x1]
    %v129 = vperm.slane %v127, 0
    %139 = vst [vmem:[#allocation1] ss:$4 sm:$0xff] %v21
    %s140 = scalar_lea.vmem [#allocation1], 1
    %141 = vst [vmem:[%s140] ss:$4 sm:$0xff] %v23
    %s142 = scalar_lea.vmem [#allocation1], 2
    %143 = vst [vmem:[%s142] ss:$4 sm:$0xff] %v25
    %s144 = scalar_lea.vmem [#allocation1], 3
    %145 = vst [vmem:[%s144] ss:$4 sm:$0xff] %v27
    %s146 = scalar_lea.vmem [#allocation1], 32
    %147 = vst [vmem:[%s146] ss:$4 sm:$0xff] %v22
    %s148 = scalar_lea.vmem [#allocation1], 33
    %149 = vst [vmem:[%s148] ss:$4 sm:$0xff] %v24
    %s150 = scalar_lea.vmem [#allocation1], 34
    %151 = vst [vmem:[%s150] ss:$4 sm:$0xff] %v26
    %s152 = scalar_lea.vmem [#allocation1], 35
    %153 = vst [vmem:[%s152] ss:$4 sm:$0xff] %v28
    %v154 = vld.sshfl [vmem:[#allocation1] sm:$0xff pattern:$0x73625140]
    %v155 = vld.sshfl [vmem:[#allocation1 + $0x8] sm:$0xff pattern:$0x73625140]
    %v156 = vld.sshfl [vmem:[#allocation1 + $0x10] sm:$0xff pattern:$0x73625140]
    %v157 = vld.sshfl [vmem:[#allocation1 + $0x18] sm:$0xff pattern:$0x73625140]
    %v158 = vld.sshfl [vmem:[#allocation1 + $0x20] sm:$0xff pattern:$0x73625140]
    %v159 = vld.sshfl [vmem:[#allocation1 + $0x28] sm:$0xff pattern:$0x73625140]
    %v160 = vld.sshfl [vmem:[#allocation1 + $0x30] sm:$0xff pattern:$0x73625140]
    %vm167 = vcmask 130048
    %v168 = vsel %vm167, %v160, 0
    %170 = vmatpush.msra.mxu0 %v44
    %171 = vmatpush.msra.mxu0 %v43
    %172 = vmatpush.msra.mxu0 %v42
    %173 = vmatpush.msra.mxu0 %v41
    %174 = vmatpush.msra.mxu0 %v40
    %175 = vmatpush.msra.mxu0 %v39
    %176 = vmatpush.msra.mxu0 %v38
    %177 = vmatpush.msra.mxu0 %v37
    %178 = vmatpush.msra.mxu0 %v36
    %179 = vmatpush.msra.mxu0 %v35
    %180 = vmatpush.msra.mxu0 %v34
    %181 = vmatpush.msra.mxu0 %v33
    %182 = vmatpush.msra.mxu0 %v32
    %183 = vmatpush.msra.mxu0 %v31
    %184 = vmatpush.msra.mxu0 %v30
    %185 = vmatpush.msra.mxu0 %v29
    %186 = vmatmul.f32.gmra.mxu0 %v154
    %v187 = vpop.f32.mrf.mxu0
    %v188 = vadd.f32 %v129, %v187
    %189 = vdwg.mxu0
    %190 = vmatpush.msra.mxu0 %v60
    %191 = vmatpush.msra.mxu0 %v59
    %192 = vmatpush.msra.mxu0 %v58
    %193 = vmatpush.msra.mxu0 %v57
    %194 = vmatpush.msra.mxu0 %v56
    %195 = vmatpush.msra.mxu0 %v55
    %196 = vmatpush.msra.mxu0 %v54
    %197 = vmatpush.msra.mxu0 %v53
    %198 = vmatpush.msra.mxu0 %v52
    %199 = vmatpush.msra.mxu0 %v51
    %200 = vmatpush.msra.mxu0 %v50
    %201 = vmatpush.msra.mxu0 %v49
    %202 = vmatpush.msra.mxu0 %v48
    %203 = vmatpush.msra.mxu0 %v47
    %204 = vmatpush.msra.mxu0 %v46
    %205 = vmatpush.msra.mxu0 %v45
    %206 = vmatmul.f32.gmra.mxu0 %v155
    %v207 = vpop.f32.mrf.mxu0
    %v208 = vadd.f32 %v188, %v207
    %209 = vdwg.mxu0
    %210 = vmatpush.msra.mxu0 %v76
    %211 = vmatpush.msra.mxu0 %v75
    %212 = vmatpush.msra.mxu0 %v74
    %213 = vmatpush.msra.mxu0 %v73
    %214 = vmatpush.msra.mxu0 %v72
    %215 = vmatpush.msra.mxu0 %v71
    %216 = vmatpush.msra.mxu0 %v70
    %217 = vmatpush.msra.mxu0 %v69
    %218 = vmatpush.msra.mxu0 %v68
    %219 = vmatpush.msra.mxu0 %v67
    %220 = vmatpush.msra.mxu0 %v66
    %221 = vmatpush.msra.mxu0 %v65
    %222 = vmatpush.msra.mxu0 %v64
    %223 = vmatpush.msra.mxu0 %v63
    %224 = vmatpush.msra.mxu0 %v62
    %225 = vmatpush.msra.mxu0 %v61
    %226 = vmatmul.f32.gmra.mxu0 %v156
    %v227 = vpop.f32.mrf.mxu0
    %v228 = vadd.f32 %v208, %v227
    %229 = vdwg.mxu0
    %230 = vmatpush.msra.mxu0 %v92
    %231 = vmatpush.msra.mxu0 %v91
    %232 = vmatpush.msra.mxu0 %v90
    %233 = vmatpush.msra.mxu0 %v89
    %234 = vmatpush.msra.mxu0 %v88
    %235 = vmatpush.msra.mxu0 %v87
    %236 = vmatpush.msra.mxu0 %v86
    %237 = vmatpush.msra.mxu0 %v85
    %238 = vmatpush.msra.mxu0 %v84
    %239 = vmatpush.msra.mxu0 %v83
    %240 = vmatpush.msra.mxu0 %v82
    %241 = vmatpush.msra.mxu0 %v81
    %242 = vmatpush.msra.mxu0 %v80
    %243 = vmatpush.msra.mxu0 %v79
    %244 = vmatpush.msra.mxu0 %v78
    %245 = vmatpush.msra.mxu0 %v77
    %246 = vmatmul.f32.gmra.mxu0 %v157
    %v247 = vpop.f32.mrf.mxu0
    %v248 = vadd.f32 %v228, %v247
    %249 = vdwg.mxu0
    %250 = vmatpush.msra.mxu0 %v108
    %251 = vmatpush.msra.mxu0 %v107
    %252 = vmatpush.msra.mxu0 %v106
    %253 = vmatpush.msra.mxu0 %v105
    %254 = vmatpush.msra.mxu0 %v104
    %255 = vmatpush.msra.mxu0 %v103
    %256 = vmatpush.msra.mxu0 %v102
    %257 = vmatpush.msra.mxu0 %v101
    %258 = vmatpush.msra.mxu0 %v100
    %259 = vmatpush.msra.mxu0 %v99
    %260 = vmatpush.msra.mxu0 %v98
    %261 = vmatpush.msra.mxu0 %v97
    %262 = vmatpush.msra.mxu0 %v96
    %263 = vmatpush.msra.mxu0 %v95
    %264 = vmatpush.msra.mxu0 %v94
    %265 = vmatpush.msra.mxu0 %v93
    %266 = vmatmul.f32.gmra.mxu0 %v158
    %v267 = vpop.f32.mrf.mxu0
    %v268 = vadd.f32 %v248, %v267
    %269 = vdwg.mxu0
    %270 = vmatpush.msra.mxu0 %v124
    %271 = vmatpush.msra.mxu0 %v123
    %272 = vmatpush.msra.mxu0 %v122
    %273 = vmatpush.msra.mxu0 %v121
    %274 = vmatpush.msra.mxu0 %v120
    %275 = vmatpush.msra.mxu0 %v119
    %276 = vmatpush.msra.mxu0 %v118
    %277 = vmatpush.msra.mxu0 %v117
    %278 = vmatpush.msra.mxu0 %v116
    %279 = vmatpush.msra.mxu0 %v115
    %280 = vmatpush.msra.mxu0 %v114
    %281 = vmatpush.msra.mxu0 %v113
    %282 = vmatpush.msra.mxu0 %v112
    %283 = vmatpush.msra.mxu0 %v111
    %284 = vmatpush.msra.mxu0 %v110
    %285 = vmatpush.msra.mxu0 %v109
    %286 = vmatmul.f32.gmra.mxu0 %v159
    %v287 = vpop.f32.mrf.mxu0
    %v288 = vadd.f32 %v268, %v287
    %289 = vdwg.mxu0
    %290 = vmatpush.msra.mxu0 0.0
    %291 = vmatpush.msra.mxu0 0.0
    %292 = vmatpush.msra.mxu0 0.0
    %293 = vmatpush.msra.mxu0 0.0
    %294 = vmatpush.msra.mxu0 0.0
    %295 = vmatpush.msra.mxu0 0.0
    %296 = vmatpush.msra.mxu0 0.0
    %297 = vmatpush.msra.mxu0 0.0
    %298 = vmatpush.msra.mxu0 0.0
    %299 = vmatpush.msra.mxu0 0.0
    %300 = vmatpush.msra.mxu0 0.0
    %301 = vmatpush.msra.mxu0 0.0
    %302 = vmatpush.msra.mxu0 0.0
    %303 = vmatpush.msra.mxu0 0.0
    %304 = vmatpush.msra.mxu0 %v126
    %305 = vmatpush.msra.mxu0 %v125
    %306 = vmatmul.f32.gmra.mxu0 %v168
    %v307 = vpop.f32.mrf.mxu0
    %v308 = vadd.f32 %v288, %v307
    %309 = vdwg.mxu0
    %v310 = vld [vmem:[%s3] sm:$0xff]
    %v311 = vld [vmem:[%s3 + $0x8] sm:$0xff]
    %v312 = vld [vmem:[%s3 + $0x10] sm:$0xff]
    %v313 = vld [vmem:[%s3 + $0x18] sm:$0xff]
    %v314 = vld [vmem:[%s3 + $0x20] sm:$0xff]
    %v315 = vld [vmem:[%s3 + $0x28] sm:$0xff]
    %v316 = vld [vmem:[%s3 + $0x30] sm:$0xff]
    %v317 = vld [vmem:[%s3 + $0x38] sm:$0xff]
    %v318 = vld [vmem:[%s4] sm:$0x1]
    %v320 = vperm.slane %v318, 0
    %vm322 = vcmask 523264
    %v324 = vsel %vm322, %v308, 0
    %326 = vmatpush.msra.mxu0 0.0
    %327 = vmatpush.msra.mxu0 0.0
    %328 = vmatpush.msra.mxu0 0.0
    %329 = vmatpush.msra.mxu0 0.0
    %330 = vmatpush.msra.mxu0 0.0
    %331 = vmatpush.msra.mxu0 0.0
    %332 = vmatpush.msra.mxu0 0.0
    %333 = vmatpush.msra.mxu0 0.0
    %334 = vmatpush.msra.mxu0 %v317
    %335 = vmatpush.msra.mxu0 %v316
    %336 = vmatpush.msra.mxu0 %v315
    %337 = vmatpush.msra.mxu0 %v314
    %338 = vmatpush.msra.mxu0 %v313
    %339 = vmatpush.msra.mxu0 %v312
    %340 = vmatpush.msra.mxu0 %v311
    %341 = vmatpush.msra.mxu0 %v310
    %342 = vmatmul.f32.gmra.mxu0 %v324
    %v343 = vpop.f32.mrf.mxu0
    %v344 = vadd.f32 %v320, %v343
    %345 = vdwg.mxu0
    %346 = vst [vmem:[#allocation2] sm:$0xff] %v344
    // Predicated region
    $region22: #{double_layer_forward.1} parent=1 // pred_check
      _
    $region23: #{double_layer_forward.1} parent=1 // pred_check_branch
      %348 = sbr.rel (0) target = $region25
    $region24: #{double_layer_forward.1} parent=1 // pred_region
      %350 = vsyncadd [#allocation3], 96
      %s351 = sshll.u32 [#allocation2], 4
      %s352 = int_to_ptr.vmem [resolvable:$true] %s351
      %s353 = sshll.u32 %s5, 4
      %s354 = int_to_ptr.hbm [resolvable:$true] %s353
      %359 = dma.vmem_to_hbm [thread:$0]  %s352, 32, %s354, [#allocation3], 32, 32, 2
    $region25: #{double_layer_forward.1} parent=1 // pred_fallthru
      _
    // Predicated region
    $region26: #{double_layer_forward.1} parent=1 // pred_check
      _
    $region27: #{double_layer_forward.1} parent=1 // pred_check_branch
      %361 = sbr.rel (0) target = $region29
    $region28: #{double_layer_forward.1} parent=1 // pred_region
      %363 = dma.done [#allocation3], 128
    $region29: #{double_layer_forward.1} parent=1 // pred_fallthru
      _
    %364 = vsyncpa [#allocation3], 1

</llo_original>
